<compile_context>
chip_gen: v6e
topology: v6e:2x2x1
jax: 0.10.0
libtpu: 0.0.40
codegen_flags: <defaults>
</compile_context>

<pallas_src>
import jax
import jax.numpy as jnp
from jax.experimental import pallas as pl
from jax.experimental.pallas import tpu as pltpu

_EPS = 1e-5


def _round_up(x, m):
    return (x + m - 1) // m * m


def _vmem_capacity_bytes():
    try:
        return int(pltpu.get_tpu_info().vmem_capacity_bytes)
    except Exception:
        return 64 * 1024 * 1024          # conservative fallback (v7x per-TC VMEM)


# ---------------------------------------------------------------------------
# Kernels
# ---------------------------------------------------------------------------
def _ln_kernel(x_ref, w_ref, b_ref, o_ref):
    """Block (tile_rows, C): WithBias_LayerNorm along the last (lane) axis."""
    x = x_ref[...].astype(jnp.float32)
    c = x.shape[-1]
    mu = jnp.sum(x, axis=-1, keepdims=True) * (1.0 / c)
    d = x - mu
    var = jnp.sum(d * d, axis=-1, keepdims=True) * (1.0 / c)   # population var
    inv = jax.lax.rsqrt(var + _EPS)
    w = w_ref[...].astype(jnp.float32)                          # (1, C)
    b = b_ref[...].astype(jnp.float32)                          # (1, C)
    o_ref[...] = (d * inv * w + b).astype(o_ref.dtype)


def _add_ln_kernel(a_ref, r_ref, w_ref, b_ref, o_ref, s_ref):
    """Fused CrossMamba prologue: s = a + r ; o = WithBias_LayerNorm(s).

    Emits both the normalized tensor (o) and the summed residual (s), which
    CrossMamba.forward returns as `under_resi`.
    """
    s = a_ref[...].astype(jnp.float32) + r_ref[...].astype(jnp.float32)
    s_ref[...] = s.astype(s_ref.dtype)
    c = s.shape[-1]
    mu = jnp.sum(s, axis=-1, keepdims=True) * (1.0 / c)
    d = s - mu
    var = jnp.sum(d * d, axis=-1, keepdims=True) * (1.0 / c)
    inv = jax.lax.rsqrt(var + _EPS)
    w = w_ref[...].astype(jnp.float32)
    b = b_ref[...].astype(jnp.float32)
    o_ref[...] = (d * inv * w + b).astype(o_ref.dtype)


# ---------------------------------------------------------------------------
# Tiling / compiler-param helpers
# ---------------------------------------------------------------------------
def _pick_tile(rows, c, itemsize, n_io, budget_bytes):
    """Largest row tile that fits the VMEM budget, keeping a multi-step grid on
    large problems so both v7x TensorCores get work."""
    # Double-buffered I/O blocks in the wire dtype + modest f32 working headroom.
    per_row = 2 * n_io * c * itemsize + 4 * c
    tile = max(budget_bytes // max(per_row, 1), 8)
    tile = min(tile, 32768)                       # hard cap (>= several MiB of I/O per block)
    if rows >= 8192:
        min_steps = 8
    elif rows >= 1024:
        min_steps = 2                             # keep both v7x TCs busy
    else:
        min_steps = 1
    tile = min(tile, _round_up(pl.cdiv(rows, min_steps), 8))
    tile = min(tile, _round_up(rows, 8))
    return max(8, (tile // 8) * 8)


def _compiler_params(tile, c, itemsize, n_io):
    cap = _vmem_capacity_bytes()
    block_io = n_io * tile * c * itemsize          # one set of in+out blocks
    est = 2 * block_io + 2 * tile * c * 4 + (4 << 20)   # double-buffer + f32 temps + margin
    vmem_limit = int(min(max(est, 16 << 20), (cap * 3) // 4))
    return pltpu.CompilerParams(dimension_semantics=("parallel",),
                                vmem_limit_bytes=vmem_limit)


# ---------------------------------------------------------------------------
# Wrappers
# ---------------------------------------------------------------------------
def withbias_layernorm(x, weight, bias):
    """WithBias_LayerNorm over the last axis: (x - mu) / sqrt(var + 1e-5) * w + b."""
    orig_shape = x.shape
    C = orig_shape[-1]
    x2 = x.reshape(-1, C)
    R = x2.shape[0]
    itemsize = jnp.dtype(x.dtype).itemsize
    budget = min(_vmem_capacity_bytes() // 2, 64 * 1024 * 1024)
    tile = _pick_tile(R, C, itemsize, n_io=2, budget_bytes=budget)
    grid = (pl.cdiv(R, tile),)
    cost = pl.CostEstimate(flops=8 * R * C, transcendentals=R,
                           bytes_accessed=2 * R * C * itemsize)
    out = pl.pallas_call(
        _ln_kernel,
        out_shape=jax.ShapeDtypeStruct((R, C), x.dtype),
        grid_spec=pltpu.PrefetchScalarGridSpec(
            num_scalar_prefetch=0,
            grid=grid,
            in_specs=[
                pl.BlockSpec((tile, C), lambda i: (i, 0)),
                pl.BlockSpec((1, C), lambda i: (0, 0)),
                pl.BlockSpec((1, C), lambda i: (0, 0)),
            ],
            out_specs=pl.BlockSpec((tile, C), lambda i: (i, 0)),
        ),
        compiler_params=_compiler_params(tile, C, itemsize, n_io=2),
        cost_estimate=cost,
    )(x2, weight.reshape(1, C), bias.reshape(1, C))
    return out.reshape(orig_shape)


def add_withbias_layernorm(a, r, weight, bias):
    """Fused CrossMamba prologue.

    Returns (WithBias_LayerNorm(a + r), a + r) — i.e. (`under`, `under_resi`)
    right before the Mamba block.
    """
    assert a.shape == r.shape
    orig_shape = a.shape
    C = orig_shape[-1]
    a2 = a.reshape(-1, C)
    r2 = r.reshape(-1, C)
    R = a2.shape[0]
    out_dtype = jnp.result_type(a.dtype, r.dtype)
    itemsize = jnp.dtype(out_dtype).itemsize
    budget = min(_vmem_capacity_bytes() // 2, 64 * 1024 * 1024)
    tile = _pick_tile(R, C, itemsize, n_io=4, budget_bytes=budget)
    grid = (pl.cdiv(R, tile),)
    cost = pl.CostEstimate(flops=10 * R * C, transcendentals=R,
                           bytes_accessed=4 * R * C * itemsize)
    normed, summed = pl.pallas_call(
        _add_ln_kernel,
        out_shape=(jax.ShapeDtypeStruct((R, C), out_dtype),
                   jax.ShapeDtypeStruct((R, C), out_dtype)),
        grid_spec=pltpu.PrefetchScalarGridSpec(
            num_scalar_prefetch=0,
            grid=grid,
            in_specs=[
                pl.BlockSpec((tile, C), lambda i: (i, 0)),
                pl.BlockSpec((tile, C), lambda i: (i, 0)),
                pl.BlockSpec((1, C), lambda i: (0, 0)),
                pl.BlockSpec((1, C), lambda i: (0, 0)),
            ],
            out_specs=(pl.BlockSpec((tile, C), lambda i: (i, 0)),
                       pl.BlockSpec((tile, C), lambda i: (i, 0))),
        ),
        compiler_params=_compiler_params(tile, C, itemsize, n_io=4),
        cost_estimate=cost,
    )(a2, r2, weight.reshape(1, C), bias.reshape(1, C))
    return normed.reshape(orig_shape), summed.reshape(orig_shape)


# ---------------------------------------------------------------------------
# Test
# ---------------------------------------------------------------------------
if __name__ == "__main__":
    key = jax.random.PRNGKey(0)

    def _ref_ln(x, w, b):
        xf = x.astype(jnp.float32)
        mu = jnp.mean(xf, axis=-1, keepdims=True)
        var = jnp.mean((xf - mu) ** 2, axis=-1, keepdims=True)
        return (xf - mu) / jnp.sqrt(var + _EPS) * w.astype(jnp.float32) \
               + b.astype(jnp.float32)

    # --- CrossMamba-sized example: (B, HW, C), x_size = (4, 4), dim = 32 ------
    B, H, W, C = 2, 4, 4, 32
    k1, k2 = jax.random.split(key)
    under = jax.random.normal(k1, (B, H * W, C), dtype=jnp.float32)
    under_resi = jax.random.normal(k2, (B, H * W, C), dtype=jnp.float32)
    weight = jnp.ones((C,), dtype=jnp.float32)    # nn.Parameter(torch.ones)
    bias = jnp.zeros((C,), dtype=jnp.float32)     # nn.Parameter(torch.zeros)

    # Fused prologue: under_resi = under + under_resi ; under = norm(under_resi)
    normed, summed = jax.block_until_ready(
        add_withbias_layernorm(under, under_resi, weight, bias))
    ref_sum = under + under_resi
    assert jnp.allclose(summed, ref_sum, atol=1e-6, rtol=1e-6)
    assert jnp.allclose(normed, _ref_ln(ref_sum, weight, bias), atol=1e-5, rtol=1e-5)

    # Second norm application (the one feeding the Mamba block): self.norm(under)
    normed2 = jax.block_until_ready(withbias_layernorm(normed, weight, bias))
    assert jnp.allclose(normed2, _ref_ln(normed, weight, bias), atol=1e-5, rtol=1e-5)
    # TODO(synk): Mamba(dim, bimamba_type='v2') (bidirectional selective scan) is an
    # external module with no definition in the spec; not implemented here.
    # TODO(synk): the 3x3 depthwise Conv2d + residual epilogue is left to XLA
    # (lax.conv_general_dilated, feature_group_count=dim), not a Pallas kernel.

    # --- ragged grid + larger hidden size (C >= 128, R not a multiple of 8) ---
    xb = jax.random.normal(key, (3, 100, 256), dtype=jnp.float32)
    wb = jax.random.normal(jax.random.PRNGKey(1), (256,), dtype=jnp.float32)
    bb = jax.random.normal(jax.random.PRNGKey(2), (256,), dtype=jnp.float32)
    yb = jax.block_until_ready(withbias_layernorm(xb, wb, bb))
    assert jnp.allclose(yb, _ref_ln(xb, wb, bb), atol=1e-4, rtol=1e-4)

    # --- bf16 I/O (compute stays f32 in-kernel) --------------------------------
    xa = under.astype(jnp.bfloat16)
    xr = under_resi.astype(jnp.bfloat16)
    nh, sh = jax.block_until_ready(add_withbias_layernorm(xa, xr, weight, bias))
    ref_sum_h = xa.astype(jnp.float32) + xr.astype(jnp.float32)
    assert jnp.allclose(nh.astype(jnp.float32), _ref_ln(ref_sum_h, weight, bias),
                        atol=5e-2, rtol=5e-2)
    assert jnp.allclose(sh.astype(jnp.float32), ref_sum_h, atol=5e-2, rtol=5e-2)

    print("KERNEL_OK")
</pallas_src>

<mosaic_0001>
module attributes {stable_mosaic.version = 11 : i64} {
  func.func @_add_ln_kernel(%arg0: i32, %arg1: memref<32x32xf32, #tpu.memory_space<vmem>>, %arg2: memref<32x32xf32, #tpu.memory_space<vmem>>, %arg3: memref<1x32xf32, #tpu.memory_space<vmem>>, %arg4: memref<1x32xf32, #tpu.memory_space<vmem>>, %arg5: memref<32x32xf32, #tpu.memory_space<vmem>>, %arg6: memref<32x32xf32, #tpu.memory_space<vmem>>) attributes {dimension_semantics = [#tpu.dimension_semantics<parallel>], iteration_bounds = array<i64: 1>, scalar_prefetch = 0 : i64, scratch_operands = 0 : i64, tpu.core_type = #tpu.core_type<tc>, window_params = [{transform_indices = @transform_0, window_bounds = array<i64: 32, 32>}, {transform_indices = @transform_1, window_bounds = array<i64: 32, 32>}, {pipeline_mode = #tpu.pipeline_mode<synchronous>, transform_indices = @transform_2, window_bounds = array<i64: 1, 32>}, {pipeline_mode = #tpu.pipeline_mode<synchronous>, transform_indices = @transform_3, window_bounds = array<i64: 1, 32>}, {transform_indices = @transform_4, window_bounds = array<i64: 32, 32>}, {transform_indices = @transform_5, window_bounds = array<i64: 32, 32>}]} {
    %c0 = arith.constant 0 : index
    %c0_0 = arith.constant 0 : index
    %0 = vector.load %arg1[%c0, %c0_0] : memref<32x32xf32, #tpu.memory_space<vmem>>, vector<32x32xf32>
    %c0_1 = arith.constant 0 : index
    %c0_2 = arith.constant 0 : index
    %1 = vector.load %arg2[%c0_1, %c0_2] : memref<32x32xf32, #tpu.memory_space<vmem>>, vector<32x32xf32>
    %2 = arith.addf %0, %1 : vector<32x32xf32>
    %c0_3 = arith.constant 0 : index
    %c0_4 = arith.constant 0 : index
    %3 = vector.load %arg6[%c0_3, %c0_4] : memref<32x32xf32, #tpu.memory_space<vmem>>, vector<32x32xf32>
    tpu.vector_store %arg6[%c0_3, %c0_4], %2 {strides = array<i32>} : memref<32x32xf32, #tpu.memory_space<vmem>>, vector<32x32xf32>,
    %cst = arith.constant dense<0.000000e+00> : vector<32xf32>
    %4 = vector.multi_reduction <add>, %2, %cst [1] : vector<32x32xf32> to vector<32xf32>
    %5 = vector.shape_cast %4 : vector<32xf32> to vector<32x1xf32>
    %cst_5 = arith.constant 3.125000e-02 : f32
    %6 = vector.broadcast %cst_5 : f32 to vector<32x1xf32>
    %7 = arith.mulf %5, %6 : vector<32x1xf32>
    %8 = vector.broadcast %7 : vector<32x1xf32> to vector<32x32xf32>
    %9 = arith.subf %2, %8 : vector<32x32xf32>
    %10 = arith.mulf %9, %9 : vector<32x32xf32>
    %cst_6 = arith.constant dense<0.000000e+00> : vector<32xf32>
    %11 = vector.multi_reduction <add>, %10, %cst_6 [1] : vector<32x32xf32> to vector<32xf32>
    %12 = vector.shape_cast %11 : vector<32xf32> to vector<32x1xf32>
    %cst_7 = arith.constant 3.125000e-02 : f32
    %13 = vector.broadcast %cst_7 : f32 to vector<32x1xf32>
    %14 = arith.mulf %12, %13 : vector<32x1xf32>
    %cst_8 = arith.constant 9.99999974E-6 : f32
    %15 = vector.broadcast %cst_8 : f32 to vector<32x1xf32>
    %16 = arith.addf %14, %15 : vector<32x1xf32>
    %17 = math.rsqrt %16 : vector<32x1xf32>
    %c0_9 = arith.constant 0 : index
    %c0_10 = arith.constant 0 : index
    %18 = vector.load %arg3[%c0_9, %c0_10] : memref<1x32xf32, #tpu.memory_space<vmem>>, vector<1x32xf32>
    %c0_11 = arith.constant 0 : index
    %c0_12 = arith.constant 0 : index
    %19 = vector.load %arg4[%c0_11, %c0_12] : memref<1x32xf32, #tpu.memory_space<vmem>>, vector<1x32xf32>
    %20 = vector.broadcast %17 : vector<32x1xf32> to vector<32x32xf32>
    %21 = arith.mulf %9, %20 : vector<32x32xf32>
    %22 = vector.broadcast %18 : vector<1x32xf32> to vector<32x32xf32>
    %23 = arith.mulf %21, %22 : vector<32x32xf32>
    %24 = vector.broadcast %19 : vector<1x32xf32> to vector<32x32xf32>
    %25 = arith.addf %23, %24 : vector<32x32xf32>
    %c0_13 = arith.constant 0 : index
    %c0_14 = arith.constant 0 : index
    %26 = vector.load %arg5[%c0_13, %c0_14] : memref<32x32xf32, #tpu.memory_space<vmem>>, vector<32x32xf32>
    tpu.vector_store %arg5[%c0_13, %c0_14], %25 {strides = array<i32>} : memref<32x32xf32, #tpu.memory_space<vmem>>, vector<32x32xf32>,
    return
  }
  func.func @transform_0(%arg0: i32) -> (i32, i32) {
    %c0_i32 = arith.constant 0 : i32
    %c0_i32_0 = arith.constant 0 : i32
    return %arg0, %c0_i32 : i32, i32
  }
  func.func @transform_1(%arg0: i32) -> (i32, i32) {
    %c0_i32 = arith.constant 0 : i32
    %c0_i32_0 = arith.constant 0 : i32
    return %arg0, %c0_i32 : i32, i32
  }
  func.func @transform_2(%arg0: i32) -> (i32, i32) {
    %c0_i32 = arith.constant 0 : i32
    %c0_i32_0 = arith.constant 0 : i32
    %c0_i32_1 = arith.constant 0 : i32
    return %c0_i32, %c0_i32_0 : i32, i32
  }
  func.func @transform_3(%arg0: i32) -> (i32, i32) {
    %c0_i32 = arith.constant 0 : i32
    %c0_i32_0 = arith.constant 0 : i32
    %c0_i32_1 = arith.constant 0 : i32
    return %c0_i32, %c0_i32_0 : i32, i32
  }
  func.func @transform_4(%arg0: i32) -> (i32, i32) {
    %c0_i32 = arith.constant 0 : i32
    %c0_i32_0 = arith.constant 0 : i32
    return %arg0, %c0_i32 : i32, i32
  }
  func.func @transform_5(%arg0: i32) -> (i32, i32) {
    %c0_i32 = arith.constant 0 : i32
    %c0_i32_0 = arith.constant 0 : i32
    return %arg0, %c0_i32 : i32, i32
  }
}

</mosaic_0001>

<llo_original>
// kernel: tpu_custom_call.1
$region0: #{tpu_custom_call.1}
  #allocation0 [shape = 'u32[]', space=smem, size = 0x4, offset = 0x4, fixed_abs, tag = 'smem constant byte address 0x4 - core index']
  #allocation1 [shape = 'u32[144,128]{1,0:T(1,128)}', space=vmem, size = 0x12000, scoped, tag = 'internal scratch']
  %s0 = inlined_call_operand.hbm [shape: f32[32,32], index: 0, kind: input, shape index: {}]
  %s1 = inlined_call_operand.hbm [shape: f32[32,32], index: 1, kind: input, shape index: {}]
  %s2 = inlined_call_operand.vmem [shape: f32[1,32], index: 2, kind: input, shape index: {}]
  %s3 = inlined_call_operand.vmem [shape: f32[1,32], index: 3, kind: input, shape index: {}]
  %s4 = inlined_call_operand.hbm [shape: f32[32,32], index: 4, kind: output, shape index: {0}]
  %s5 = inlined_call_operand.hbm [shape: f32[32,32], index: 5, kind: output, shape index: {1}]
  %6 = xla_tuple %s4, %s5
  %s7 = sld [smem:[#allocation0]]
  $region42: #{tpu_custom_call.1} parent=0
    _
  %s9 = ssub.s32 1, %s7
  %s10 = scalar_select 0, %s9, %s7
  $region1: #{tpu_custom_call.1} parent=0
    #allocation2 [shape = 'u8[16384]{0}', space=vmem, size = 0x4000, scoped, tag = 'input window, operand 0, single buffered']
    #allocation3 [shape = 's32[1]{0}', space=sflag, size = 0x4, scoped, tag = 'scoped memory for tpu_custom_call.1']
    #allocation4 [shape = 's32[1]{0}', space=sflag, size = 0x4, scoped, tag = 'scoped memory for tpu_custom_call.1']
    #allocation5 [shape = 'u8[16384]{0}', space=vmem, size = 0x4000, scoped, tag = 'input window, operand 1, single buffered']
    #allocation6 [shape = 's32[1]{0}', space=sflag, size = 0x4, scoped, tag = 'scoped memory for tpu_custom_call.1']
    #allocation7 [shape = 'u8[16384]{0}', space=vmem, size = 0x4000, scoped, tag = 'output window, operand 0, single buffered']
    #allocation8 [shape = 'u8[16384]{0}', space=vmem, size = 0x4000, scoped, tag = 'output window, operand 1, single buffered']
    #allocation9 [shape = 's32[1]{0}', space=sflag, size = 0x4, scoped, tag = 'scoped memory for tpu_custom_call.1']
    %11 = vsyncpa [#allocation3], 0
    %12 = vsyncpa [#allocation6], 0
    %13 = vsyncpa [#allocation4], 0
    %14 = vsyncpa [#allocation9], 0
    // Predicated region
    $region2: #{tpu_custom_call.1} parent=1 // pred_check
      _
    $region3: #{tpu_custom_call.1} parent=1 // pred_check_branch
      %16 = sbr.rel (0) target = $region5
    $region4: #{tpu_custom_call.1} parent=1 // pred_region
      %s18 = ssub.s32 512, 512
      %19 = vsyncadd [#allocation3], %s18
      %s20 = sshll.u32 [#allocation2], 4
      %s21 = int_to_ptr.vmem [resolvable:$true] %s20
      %26 = dma.hbm_to_vmem [thread:$0]  %s0, 512, %s21, [#allocation3], 128, 128, 8
    $region5: #{tpu_custom_call.1} parent=1 // pred_fallthru
      _
    // Predicated region
    $region6: #{tpu_custom_call.1} parent=1 // pred_check
      _
    $region7: #{tpu_custom_call.1} parent=1 // pred_check_branch
      %28 = sbr.rel (0) target = $region9
    $region8: #{tpu_custom_call.1} parent=1 // pred_region
      %s30 = ssub.s32 512, 512
      %31 = vsyncadd [#allocation6], %s30
      %s32 = sshll.u32 [#allocation5], 4
      %s33 = int_to_ptr.vmem [resolvable:$true] %s32
      %38 = dma.hbm_to_vmem [thread:$0]  %s1, 512, %s33, [#allocation6], 128, 128, 8
    $region9: #{tpu_custom_call.1} parent=1 // pred_fallthru
      _
    // Predicated region
    $region10: #{tpu_custom_call.1} parent=1 // pred_check
      _
    $region11: #{tpu_custom_call.1} parent=1 // pred_check_branch
      %40 = sbr.rel (0) target = $region13
    $region12: #{tpu_custom_call.1} parent=1 // pred_region
      _
    $region13: #{tpu_custom_call.1} parent=1 // pred_fallthru
      _
    // Predicated region
    $region14: #{tpu_custom_call.1} parent=1 // pred_check
      _
    $region15: #{tpu_custom_call.1} parent=1 // pred_check_branch
      %42 = sbr.rel (0) target = $region17
    $region16: #{tpu_custom_call.1} parent=1 // pred_region
      _
    $region17: #{tpu_custom_call.1} parent=1 // pred_fallthru
      _
    // Predicated region
    $region18: #{tpu_custom_call.1} parent=1 // pred_check
      _
    $region19: #{tpu_custom_call.1} parent=1 // pred_check_branch
      %44 = sbr.rel (0) target = $region21
    $region20: #{tpu_custom_call.1} parent=1 // pred_region
      %45 = dma.done [#allocation3], 512
    $region21: #{tpu_custom_call.1} parent=1 // pred_fallthru
      _
    // Predicated region
    $region22: #{tpu_custom_call.1} parent=1 // pred_check
      _
    $region23: #{tpu_custom_call.1} parent=1 // pred_check_branch
      %47 = sbr.rel (0) target = $region25
    $region24: #{tpu_custom_call.1} parent=1 // pred_region
      %48 = dma.done [#allocation6], 512
    $region25: #{tpu_custom_call.1} parent=1 // pred_fallthru
      _
    %v49 = vld [vmem:[#allocation2] sm:$0xff]
    %v50 = vld [vmem:[#allocation2 + $0x8] sm:$0xff]
    %v51 = vld [vmem:[#allocation2 + $0x10] sm:$0xff]
    %v52 = vld [vmem:[#allocation2 + $0x18] sm:$0xff]
    %v53 = vld [vmem:[#allocation5] sm:$0xff]
    %v54 = vld [vmem:[#allocation5 + $0x8] sm:$0xff]
    %v55 = vld [vmem:[#allocation5 + $0x10] sm:$0xff]
    %v56 = vld [vmem:[#allocation5 + $0x18] sm:$0xff]
    %v57 = vadd.f32 %v49, %v53
    %v58 = vadd.f32 %v50, %v54
    %v59 = vadd.f32 %v51, %v55
    %v60 = vadd.f32 %v52, %v56
    %vm61 = vcmask 261120
    %62 = vst.msk [vmem:[#allocation8] sm:$0xff] %vm61, %v57
    %63 = vst.msk [vmem:[#allocation8 + $0x8] sm:$0xff] %vm61, %v58
    %64 = vst.msk [vmem:[#allocation8 + $0x10] sm:$0xff] %vm61, %v59
    %65 = vst.msk [vmem:[#allocation8 + $0x18] sm:$0xff] %vm61, %v60
    %v66 = vsel %vm61, %v57, 0.0
    %67 = vadd.xlane.f32.xlu0 %v66
    %v68 = vpop.xlane.xlu0 %67
    %v69 = vsel %vm61, %v58, 0.0
    %70 = vadd.xlane.f32.xlu0 %v69
    %v71 = vpop.xlane.xlu0 %70
    %v72 = vsel %vm61, %v59, 0.0
    %73 = vadd.xlane.f32.xlu0 %v72
    %v74 = vpop.xlane.xlu0 %73
    %v75 = vsel %vm61, %v60, 0.0
    %76 = vadd.xlane.f32.xlu0 %v75
    %v77 = vpop.xlane.xlu0 %76
    %v78 = vmul.f32 %v68, 0.03125
    %v79 = vmul.f32 %v71, 0.03125
    %v80 = vmul.f32 %v74, 0.03125
    %v81 = vmul.f32 %v77, 0.03125
    %v82 = vsub.f32 %v57, %v78
    %v83 = vsub.f32 %v58, %v79
    %v84 = vsub.f32 %v59, %v80
    %v85 = vsub.f32 %v60, %v81
    %v86 = vmul.f32 %v82, %v82
    %v87 = vmul.f32 %v83, %v83
    %v88 = vmul.f32 %v84, %v84
    %v89 = vmul.f32 %v85, %v85
    %v90 = vsel %vm61, %v86, 0.0
    %91 = vadd.xlane.f32.xlu0 %v90
    %v92 = vpop.xlane.xlu0 %91
    %v93 = vsel %vm61, %v87, 0.0
    %94 = vadd.xlane.f32.xlu0 %v93
    %v95 = vpop.xlane.xlu0 %94
    %v96 = vsel %vm61, %v88, 0.0
    %97 = vadd.xlane.f32.xlu0 %v96
    %v98 = vpop.xlane.xlu0 %97
    %v99 = vsel %vm61, %v89, 0.0
    %100 = vadd.xlane.f32.xlu0 %v99
    %v101 = vpop.xlane.xlu0 %100
    %v102 = vmul.f32 %v92, 0.03125
    %v103 = vmul.f32 %v95, 0.03125
    %v104 = vmul.f32 %v98, 0.03125
    %v105 = vmul.f32 %v101, 0.03125
    %v106 = vadd.f32 %v102, 1e-05
    %v107 = vadd.f32 %v103, 1e-05
    %v108 = vadd.f32 %v104, 1e-05
    %v109 = vadd.f32 %v105, 1e-05
    %v110 = vrsqrt.pop %v106
    %v111 = vrsqrt.pop %v107
    %v112 = vrsqrt.pop %v108
    %v113 = vrsqrt.pop %v109
    %v114 = vld [vmem:[%s2] sm:$0x1]
    %v115 = vld [vmem:[%s3] sm:$0x1]
    %v116 = vmul.f32 %v82, %v110
    %v117 = vmul.f32 %v83, %v111
    %v118 = vmul.f32 %v84, %v112
    %v119 = vmul.f32 %v85, %v113
    %v121 = vlaneseq
    %v122 = vshrl.u32 %v121, 7
    %v123 = vsub.s32 0, %v122
    %v124 = vrot.slane %v114, %v123
    %v126 = vmul.f32 %v116, %v124
    %v127 = vmul.f32 %v117, %v124
    %v128 = vmul.f32 %v118, %v124
    %v129 = vmul.f32 %v119, %v124
    %v131 = vlaneseq
    %v132 = vshrl.u32 %v131, 7
    %v133 = vsub.s32 0, %v132
    %v134 = vrot.slane %v115, %v133
    %v136 = vadd.f32 %v126, %v134
    %v137 = vadd.f32 %v127, %v134
    %v138 = vadd.f32 %v128, %v134
    %v139 = vadd.f32 %v129, %v134
    %140 = vst.msk [vmem:[#allocation7] sm:$0xff] %vm61, %v136
    %141 = vst.msk [vmem:[#allocation7 + $0x8] sm:$0xff] %vm61, %v137
    %142 = vst.msk [vmem:[#allocation7 + $0x10] sm:$0xff] %vm61, %v138
    %143 = vst.msk [vmem:[#allocation7 + $0x18] sm:$0xff] %vm61, %v139
    // Predicated region
    $region26: #{tpu_custom_call.1} parent=1 // pred_check
      _
    $region27: #{tpu_custom_call.1} parent=1 // pred_check_branch
      %145 = sbr.rel (0) target = $region29
    $region28: #{tpu_custom_call.1} parent=1 // pred_region
      %s147 = ssub.s32 512, 512
      %148 = vsyncadd [#allocation4], %s147
      %s149 = sshll.u32 [#allocation7], 4
      %s150 = int_to_ptr.vmem [resolvable:$true] %s149
      %155 = dma.vmem_to_hbm [thread:$0]  %s150, 512, %s4, [#allocation4], 128, 128, 8
    $region29: #{tpu_custom_call.1} parent=1 // pred_fallthru
      _
    // Predicated region
    $region30: #{tpu_custom_call.1} parent=1 // pred_check
      _
    $region31: #{tpu_custom_call.1} parent=1 // pred_check_branch
      %157 = sbr.rel (0) target = $region33
    $region32: #{tpu_custom_call.1} parent=1 // pred_region
      %s159 = ssub.s32 512, 512
      %160 = vsyncadd [#allocation9], %s159
      %s161 = sshll.u32 [#allocation8], 4
      %s162 = int_to_ptr.vmem [resolvable:$true] %s161
      %167 = dma.vmem_to_hbm [thread:$0]  %s162, 512, %s5, [#allocation9], 128, 128, 8
    $region33: #{tpu_custom_call.1} parent=1 // pred_fallthru
      _
    // Predicated region
    $region34: #{tpu_custom_call.1} parent=1 // pred_check
      _
    $region35: #{tpu_custom_call.1} parent=1 // pred_check_branch
      %169 = sbr.rel (0) target = $region37
    $region36: #{tpu_custom_call.1} parent=1 // pred_region
      %170 = dma.done [#allocation4], 512
    $region37: #{tpu_custom_call.1} parent=1 // pred_fallthru
      _
    // Predicated region
    $region38: #{tpu_custom_call.1} parent=1 // pred_check
      _
    $region39: #{tpu_custom_call.1} parent=1 // pred_check_branch
      %172 = sbr.rel (0) target = $region41
    $region40: #{tpu_custom_call.1} parent=1 // pred_region
      %173 = dma.done [#allocation9], 512
    $region41: #{tpu_custom_call.1} parent=1 // pred_fallthru
      _
    %174 = vsyncpa [#allocation3], 1
    %175 = vsyncpa [#allocation6], 1
    %176 = vsyncpa [#allocation4], 1
    %177 = vsyncpa [#allocation9], 1

</llo_original>
